<compile_context>
chip_gen: v7x
topology: tpu7x:2x2x1
jax: 0.10.0
libtpu: 0.0.40
codegen_flags: <defaults>
</compile_context>

<pallas_src>
import functools

import jax
import jax.numpy as jnp
from jax.experimental import pallas as pl
from jax.experimental.pallas import tpu as pltpu

LANE = 128          # lane width
SUB = 8             # f32 sublane count
MAX_TILE_M = 4096   # rows per grid step -> 4096*128*4 B = 2 MiB per input block


def _bce_partial_kernel(rows, tile_m, steps_per_part, num_full_tiles, fold, need_mask,
                        params_ref, ypred_ref, ytgt_ref, out_ref):
    p = pl.program_id(0)   # parallel partition (independent partial sum)
    j = pl.program_id(1)   # accumulation step within the partition

    # Output block index is constant across j, so it stays VMEM-resident: accumulate into it
    # directly (no scratch), zeroing at the first step of each partition.
    @pl.when(j == 0)
    def _():
        out_ref[...] = jnp.zeros_like(out_ref)

    pos_weight = params_ref[0]

    # Compute in f32 regardless of the HBM dtype (v5e has no bf16 VPU/EUP).
    x = ypred_ref[...].astype(jnp.float32)
    y = ytgt_ref[...].astype(jnp.float32)

    # PyTorch BCEWithLogitsLoss with pos_weight pw (per element):
    #   l = (1 - y) * x + (1 + (pw - 1) * y) * softplus(-x)
    # softplus(-x) computed stably as log1p(exp(-|x|)) + max(-x, 0).
    log_weight = 1.0 + (pos_weight - 1.0) * y
    softplus_neg_x = jnp.log1p(jnp.exp(-jnp.abs(x))) + jnp.maximum(-x, 0.0)
    loss = (1.0 - y) * x + log_weight * softplus_neg_x

    def fold_rows(v):
        # Fold the (tile_m, 128) tile down to a fixed (fold, 128) partial; fold rows give
        # independent accumulator vregs (ILP) and keep store pressure constant as tiles grow.
        return v.reshape(tile_m // fold, fold, LANE).sum(axis=0)

    if need_mask:
        # Logical (unclamped) tile index; a clamped duplicate tile or the garbage rows of a
        # ragged boundary tile contribute exactly zero via the row-level mask below.
        tile_idx = p * steps_per_part + j

        @pl.when(tile_idx < num_full_tiles)
        def _():  # mask-free fast path: every row of this tile is valid
            out_ref[...] += fold_rows(loss)

        @pl.when(tile_idx >= num_full_tiles)
        def _():  # boundary / duplicate tile: row-level validity vs. a scalar remainder
            rem = rows - tile_idx * tile_m           # <= 0 for a clamped duplicate tile
            row_ids = jax.lax.broadcasted_iota(jnp.int32, (tile_m, LANE), 0)
            # Select AFTER computing the loss on stale-VMEM garbage and BEFORE the fold, so
            # NaN/Inf garbage cannot leak through.
            out_ref[...] += fold_rows(jnp.where(row_ids < rem, loss, 0.0))
    else:
        out_ref[...] += fold_rows(loss)


def _num_partitions(num_tiles):
    """2-way 'parallel' split only where a second TensorCore exists, and only when it cannot
    force a wasteful duplicate-tile DMA for small/odd tile counts."""
    try:
        kind = jax.devices()[0].device_kind.lower()
    except Exception:  # pragma: no cover
        kind = ""
    multi_core = any(tag in kind for tag in ("v7", "7x", "v4", "v5p"))
    if multi_core and num_tiles >= 2 and (num_tiles % 2 == 0 or num_tiles >= 8):
        return 2
    return 1


def simple_loss(ypred, ytgt, pos_weight):
    """Equivalent of SimpleLoss(pos_weight).forward(ypred, ytgt) -> scalar mean loss."""
    n = ypred.size
    flat_pred = ypred.reshape(-1)
    flat_tgt = ytgt.reshape(-1)
    pw = jnp.float32(pos_weight)

    n_main = (n // LANE) * LANE       # 128-aligned prefix handled by the kernel
    total = jnp.float32(0.0)

    if n_main:
        rows = n_main // LANE
        # Zero-copy (pure bitcast reshape) when n is already 128-aligned; otherwise a single
        # small prefix slice — never a full jnp.pad copy of both arrays.
        pred2d = flat_pred[:n_main].reshape(rows, LANE)
        tgt2d = flat_tgt[:n_main].reshape(rows, LANE)

        if rows >= SUB:
            tile_m = min(MAX_TILE_M, (rows // SUB) * SUB)   # multiple of 8
        else:
            tile_m = rows                                   # single block == full array dims
        num_tiles = pl.cdiv(rows, tile_m)
        num_full_tiles = rows // tile_m
        num_parts = _num_partitions(num_tiles)
        steps = pl.cdiv(num_tiles, num_parts)
        need_mask = (num_parts * steps) > num_full_tiles    # ragged last tile or duplicate tile

        fold = next((f for f in (64, 32, 16, 8) if tile_m % f == 0), tile_m)

        params = jnp.asarray(pos_weight, dtype=jnp.float32).reshape(1)

        def data_map(p, j):
            # Clamp so the (at most one) logically-out-of-range tile re-reads the last valid
            # tile; its contribution is removed by the in-kernel row mask.
            return (jnp.minimum(p * steps + j, num_tiles - 1), 0)

        kernel = functools.partial(_bce_partial_kernel, rows, tile_m, steps,
                                   num_full_tiles, fold, need_mask)

        partials = pl.pallas_call(
            kernel,
            out_shape=jax.ShapeDtypeStruct((num_parts * fold, LANE), jnp.float32),
            grid_spec=pltpu.PrefetchScalarGridSpec(
                num_scalar_prefetch=0,
                grid=(num_parts, steps),
                in_specs=[
                    pl.BlockSpec(memory_space=pltpu.SMEM),    # [pos_weight] scalar
                    pl.BlockSpec((tile_m, LANE), data_map),   # logits
                    pl.BlockSpec((tile_m, LANE), data_map),   # targets
                ],
                out_specs=pl.BlockSpec((fold, LANE), lambda p, j: (p, 0)),
            ),
            compiler_params=pltpu.CompilerParams(
                dimension_semantics=("parallel", "arbitrary"),
            ),
        )(params, pred2d, tgt2d)
        total = total + jnp.sum(partials)

    tail = n - n_main
    if tail:  # <= 127 elements: fold with plain jnp instead of padding the full arrays
        xt = flat_pred[n_main:].astype(jnp.float32)
        yt = flat_tgt[n_main:].astype(jnp.float32)
        lw = 1.0 + (pw - 1.0) * yt
        sp = jnp.log1p(jnp.exp(-jnp.abs(xt))) + jnp.maximum(-xt, 0.0)
        total = total + jnp.sum((1.0 - yt) * xt + lw * sp)

    return total / n


def _reference_loss(ypred, ytgt, pos_weight):
    x = ypred.astype(jnp.float32)
    y = ytgt.astype(jnp.float32)
    log_weight = 1.0 + (pos_weight - 1.0) * y
    softplus_neg_x = jnp.log1p(jnp.exp(-jnp.abs(x))) + jnp.maximum(-x, 0.0)
    loss = (1.0 - y) * x + log_weight * softplus_neg_x
    return jnp.mean(loss)


if __name__ == "__main__":
    pos_weight = 2.13  # deterministic "parameter" from SimpleLoss.__init__(pos_weight)

    key = jax.random.PRNGKey(0)
    k1, k2, k3, k4 = jax.random.split(key, 4)

    # Logits and binary targets, NCHW shape as a segmentation-style prediction (128-aligned N).
    ypred = jax.random.normal(k1, (2, 4, 16, 16), dtype=jnp.float32)
    ytgt = jax.random.bernoulli(k2, p=0.3, shape=(2, 4, 16, 16)).astype(jnp.float32)

    loss = jax.block_until_ready(simple_loss(ypred, ytgt, pos_weight))
    ref = _reference_loss(ypred, ytgt, pos_weight)
    assert jnp.allclose(loss, ref, rtol=1e-5, atol=1e-6), (loss, ref)

    # Ragged case: exercises the in-kernel boundary-row mask and the <128-element jnp tail.
    ypred2 = jax.random.normal(k3, (5, 264), dtype=jnp.float32)
    ytgt2 = jax.random.bernoulli(k4, p=0.5, shape=(5, 264)).astype(jnp.float32)
    loss2 = jax.block_until_ready(simple_loss(ypred2, ytgt2, pos_weight))
    ref2 = _reference_loss(ypred2, ytgt2, pos_weight)
    assert jnp.allclose(loss2, ref2, rtol=1e-5, atol=1e-6), (loss2, ref2)

    print("KERNEL_OK")
</pallas_src>

<mosaic_0001>
module attributes {stable_mosaic.version = 11 : i64} {
  func.func @_bce_partial_kernel(%arg0: i32, %arg1: i32, %arg2: memref<1xf32, #tpu.memory_space<smem>>, %arg3: memref<16x128xf32, #tpu.memory_space<vmem>>, %arg4: memref<16x128xf32, #tpu.memory_space<vmem>>, %arg5: memref<16x128xf32, #tpu.memory_space<vmem>>) attributes {dimension_semantics = [#tpu.dimension_semantics<parallel>, #tpu.dimension_semantics<arbitrary>], iteration_bounds = array<i64: 1, 1>, scalar_prefetch = 0 : i64, scratch_operands = 0 : i64, tpu.core_type = #tpu.core_type<tc>, window_params = [{transform_indices = @transform_0, window_bounds = array<i64: 1>}, {transform_indices = @transform_1, window_bounds = array<i64: 16, 128>}, {transform_indices = @transform_2, window_bounds = array<i64: 16, 128>}, {transform_indices = @transform_3, window_bounds = array<i64: 16, 128>}]} {
    %c0_i32 = arith.constant 0 : i32
    %0 = arith.cmpi eq, %arg1, %c0_i32 : i32
    %1 = arith.extui %0 : i1 to i32
    %c0_i32_0 = arith.constant 0 : i32
    %2 = arith.cmpi ne, %1, %c0_i32_0 : i32
    scf.if %2 {
      %cst_15 = arith.constant 0.000000e+00 : f32
      %31 = vector.broadcast %cst_15 : f32 to vector<16x128xf32>
      %c0_16 = arith.constant 0 : index
      %c0_17 = arith.constant 0 : index
      %32 = vector.load %arg5[%c0_16, %c0_17] : memref<16x128xf32, #tpu.memory_space<vmem>>, vector<16x128xf32>
      tpu.vector_store %arg5[%c0_16, %c0_17], %31 {strides = array<i32>} : memref<16x128xf32, #tpu.memory_space<vmem>>, vector<16x128xf32>,
    } else {
    }
    %c0 = arith.constant 0 : index
    %3 = memref.load %arg2[%c0] : memref<1xf32, #tpu.memory_space<smem>>
    %c0_1 = arith.constant 0 : index
    %c0_2 = arith.constant 0 : index
    %4 = vector.load %arg3[%c0_1, %c0_2] : memref<16x128xf32, #tpu.memory_space<vmem>>, vector<16x128xf32>
    %c0_3 = arith.constant 0 : index
    %c0_4 = arith.constant 0 : index
    %5 = vector.load %arg4[%c0_3, %c0_4] : memref<16x128xf32, #tpu.memory_space<vmem>>, vector<16x128xf32>
    %cst = arith.constant 1.000000e+00 : f32
    %6 = arith.subf %3, %cst : f32
    %7 = vector.broadcast %6 : f32 to vector<16x128xf32>
    %8 = arith.mulf %7, %5 : vector<16x128xf32>
    %cst_5 = arith.constant 1.000000e+00 : f32
    %9 = vector.broadcast %cst_5 : f32 to vector<16x128xf32>
    %10 = arith.addf %9, %8 : vector<16x128xf32>
    %11 = math.absf %4 : vector<16x128xf32>
    %cst_6 = arith.constant 0.000000e+00 : f32
    %12 = vector.broadcast %cst_6 : f32 to vector<16x128xf32>
    %13 = arith.subf %12, %11 : vector<16x128xf32>
    %14 = math.exp %13 : vector<16x128xf32>
    %15 = math.log1p %14 : vector<16x128xf32>
    %cst_7 = arith.constant 0.000000e+00 : f32
    %16 = vector.broadcast %cst_7 : f32 to vector<16x128xf32>
    %17 = arith.subf %16, %4 : vector<16x128xf32>
    %cst_8 = arith.constant 0.000000e+00 : f32
    %18 = vector.broadcast %cst_8 : f32 to vector<16x128xf32>
    %19 = arith.maximumf %17, %18 : vector<16x128xf32>
    %20 = arith.addf %15, %19 : vector<16x128xf32>
    %cst_9 = arith.constant 1.000000e+00 : f32
    %21 = vector.broadcast %cst_9 : f32 to vector<16x128xf32>
    %22 = arith.subf %21, %5 : vector<16x128xf32>
    %23 = arith.mulf %22, %4 : vector<16x128xf32>
    %24 = arith.mulf %10, %20 : vector<16x128xf32>
    %25 = arith.addf %23, %24 : vector<16x128xf32>
    %c0_10 = arith.constant 0 : index
    %c0_11 = arith.constant 0 : index
    %26 = vector.load %arg5[%c0_10, %c0_11] : memref<16x128xf32, #tpu.memory_space<vmem>>, vector<16x128xf32>
    %27 = vector.shape_cast %25 : vector<16x128xf32> to vector<1x16x128xf32>
    %cst_12 = arith.constant dense<0.000000e+00> : vector<16x128xf32>
    %28 = vector.multi_reduction <add>, %27, %cst_12 [0] : vector<1x16x128xf32> to vector<16x128xf32>
    %29 = arith.addf %26, %28 : vector<16x128xf32>
    %c0_13 = arith.constant 0 : index
    %c0_14 = arith.constant 0 : index
    %30 = vector.load %arg5[%c0_13, %c0_14] : memref<16x128xf32, #tpu.memory_space<vmem>>, vector<16x128xf32>
    tpu.vector_store %arg5[%c0_13, %c0_14], %29 {strides = array<i32>} : memref<16x128xf32, #tpu.memory_space<vmem>>, vector<16x128xf32>,
    return
  }
  func.func @transform_0(%arg0: i32, %arg1: i32) -> i32 {
    %c0_i32 = arith.constant 0 : i32
    %c0_i32_0 = arith.constant 0 : i32
    return %c0_i32 : i32
  }
  func.func @transform_1(%arg0: i32, %arg1: i32) -> (i32, i32) {
    %c1_i32 = arith.constant 1 : i32
    %0 = arith.muli %arg0, %c1_i32 : i32
    %1 = arith.addi %0, %arg1 : i32
    %c0_i32 = arith.constant 0 : i32
    %2 = arith.minsi %1, %c0_i32 : i32
    %c0_i32_0 = arith.constant 0 : i32
    %c0_i32_1 = arith.constant 0 : i32
    return %2, %c0_i32_0 : i32, i32
  }
  func.func @transform_2(%arg0: i32, %arg1: i32) -> (i32, i32) {
    %c1_i32 = arith.constant 1 : i32
    %0 = arith.muli %arg0, %c1_i32 : i32
    %1 = arith.addi %0, %arg1 : i32
    %c0_i32 = arith.constant 0 : i32
    %2 = arith.minsi %1, %c0_i32 : i32
    %c0_i32_0 = arith.constant 0 : i32
    %c0_i32_1 = arith.constant 0 : i32
    return %2, %c0_i32_0 : i32, i32
  }
  func.func @transform_3(%arg0: i32, %arg1: i32) -> (i32, i32) {
    %c0_i32 = arith.constant 0 : i32
    %c0_i32_0 = arith.constant 0 : i32
    return %arg0, %c0_i32 : i32, i32
  }
}

</mosaic_0001>

<llo_original>
// kernel: tpu_custom_call.1
$region0: #{tpu_custom_call.1}
  #allocation0 [shape = 'u32[]', space=smem, size = 0x4, offset = 0x4, fixed_abs, tag = 'smem constant byte address 0x4 - core index']
  #allocation1 [shape = 'u32[144,128]{1,0:T(1,128)}', space=vmem, size = 0x12000, scoped, tag = 'internal scratch']
  #allocation2 [shape = 'f32[1]{0:T(128)S(6)}', space=smem, size = 0x200, scoped, tag = 'scoped memory for tpu_custom_call.1']
  %s0 = inlined_call_operand.<no memory space> [shape: f32[1], index: 0, kind: input, shape index: {}]
  %s1 = inlined_call_operand.hbm [shape: f32[16,128], index: 1, kind: input, shape index: {}]
  %s2 = inlined_call_operand.hbm [shape: f32[16,128], index: 2, kind: input, shape index: {}]
  %s3 = inlined_call_operand.hbm [shape: f32[16,128], index: 3, kind: output, shape index: {}]
  %s4 = sld [smem:[#allocation0]]
  $region34: #{tpu_custom_call.1} parent=0
    _
  %s6 = ssub.s32 1, %s4
  %s7 = scalar_select 0, %s6, %s4
  %8 = sst [smem:[#allocation2]] %s0
  $region1: #{tpu_custom_call.1} parent=0
    #allocation3 [shape = 'u8[8192]{0}', space=vmem, size = 0x2000, scoped, tag = 'input window, operand 1, single buffered']
    #allocation4 [shape = 's32[1]{0}', space=sflag, size = 0x4, scoped, tag = 'scoped memory for tpu_custom_call.1']
    #allocation5 [shape = 's32[1]{0}', space=sflag, size = 0x4, scoped, tag = 'scoped memory for tpu_custom_call.1']
    #allocation6 [shape = 'u8[8192]{0}', space=vmem, size = 0x2000, scoped, tag = 'input window, operand 2, single buffered']
    #allocation7 [shape = 's32[1]{0}', space=sflag, size = 0x4, scoped, tag = 'scoped memory for tpu_custom_call.1']
    #allocation8 [shape = 'u8[8192]{0}', space=vmem, size = 0x2000, scoped, tag = 'output window, operand 0, single buffered']
    %9 = vsyncpa [#allocation4], 0
    %10 = vsyncpa [#allocation7], 0
    %11 = vsyncpa [#allocation5], 0
    // Predicated region
    $region2: #{tpu_custom_call.1} parent=1 // pred_check
      _
    $region3: #{tpu_custom_call.1} parent=1 // pred_check_branch
      %13 = sbr.rel (0) target = $region5
    $region4: #{tpu_custom_call.1} parent=1 // pred_region
      _
    $region5: #{tpu_custom_call.1} parent=1 // pred_fallthru
      _
    // Predicated region
    $region6: #{tpu_custom_call.1} parent=1 // pred_check
      _
    $region7: #{tpu_custom_call.1} parent=1 // pred_check_branch
      %15 = sbr.rel (0) target = $region9
    $region8: #{tpu_custom_call.1} parent=1 // pred_region
      %s16 = sadd.s32 0, 0
      %p17 = scmp.lt.s32.totalorder %s16, 0
      %s18 = scalar_select %p17, %s16, 0
      %s19 = smul.u32 2, %s18
      %s21 = ssub.s32 256, 256
      %22 = vsyncadd [#allocation4], %s21
      %s23 = smul.addr %s19, 128
      %s24 = scalar_lea.hbm %s1, %s23
      %s25 = sshll.u32 [#allocation3], 4
      %s26 = int_to_ptr.vmem [resolvable:$true] %s25
      %31 = dma.hbm_to_vmem [thread:$0]  %s24, 256, %s26, [#allocation4], 128, 128, 8
    $region9: #{tpu_custom_call.1} parent=1 // pred_fallthru
      _
    // Predicated region
    $region10: #{tpu_custom_call.1} parent=1 // pred_check
      _
    $region11: #{tpu_custom_call.1} parent=1 // pred_check_branch
      %33 = sbr.rel (0) target = $region13
    $region12: #{tpu_custom_call.1} parent=1 // pred_region
      %s34 = sadd.s32 0, 0
      %p35 = scmp.lt.s32.totalorder %s34, 0
      %s36 = scalar_select %p35, %s34, 0
      %s37 = smul.u32 2, %s36
      %s39 = ssub.s32 256, 256
      %40 = vsyncadd [#allocation7], %s39
      %s41 = smul.addr %s37, 128
      %s42 = scalar_lea.hbm %s2, %s41
      %s43 = sshll.u32 [#allocation6], 4
      %s44 = int_to_ptr.vmem [resolvable:$true] %s43
      %49 = dma.hbm_to_vmem [thread:$0]  %s42, 256, %s44, [#allocation7], 128, 128, 8
    $region13: #{tpu_custom_call.1} parent=1 // pred_fallthru
      _
    // Predicated region
    $region14: #{tpu_custom_call.1} parent=1 // pred_check
      _
    $region15: #{tpu_custom_call.1} parent=1 // pred_check_branch
      %51 = sbr.rel (0) target = $region17
    $region16: #{tpu_custom_call.1} parent=1 // pred_region
      %52 = dma.done [#allocation4], 256
    $region17: #{tpu_custom_call.1} parent=1 // pred_fallthru
      _
    // Predicated region
    $region18: #{tpu_custom_call.1} parent=1 // pred_check
      _
    $region19: #{tpu_custom_call.1} parent=1 // pred_check_branch
      %54 = sbr.rel (0) target = $region21
    $region20: #{tpu_custom_call.1} parent=1 // pred_region
      %55 = dma.done [#allocation7], 256
    $region21: #{tpu_custom_call.1} parent=1 // pred_fallthru
      _
    %s56 = sadd.s32 0, 0
    %p57 = scmp.lt.s32.totalorder %s56, 0
    %s58 = scalar_select %p57, %s56, 0
    %s59 = smul.u32 2, %s58
    %s60 = sadd.s32 0, 0
    %p61 = scmp.lt.s32.totalorder %s60, 0
    %s62 = scalar_select %p61, %s60, 0
    %s63 = smul.u32 2, %s62
    %p64 = scmp.eq.s32.totalorder 0, 0
    // Predicated region
    $region22: #{tpu_custom_call.1} parent=1 // pred_check
      %p65 = pneg %p64
    $region23: #{tpu_custom_call.1} parent=1 // pred_check_branch
      %67 = sbr.rel (%p65) target = $region25
    $region24: #{tpu_custom_call.1} parent=1 // pred_region
      %68 = vst [vmem:[#allocation8] sm:$0xff] 0.0
      %69 = vst [vmem:[#allocation8 + $0x8] sm:$0xff] 0.0
    $region25: #{tpu_custom_call.1} parent=1 // pred_fallthru
      _
    %s70 = sld [smem:[#allocation2]]
    %v71 = vld [vmem:[#allocation3] sm:$0xff]
    %v72 = vld [vmem:[#allocation3 + $0x8] sm:$0xff]
    %v73 = vld [vmem:[#allocation6] sm:$0xff]
    %v74 = vld [vmem:[#allocation6 + $0x8] sm:$0xff]
    %s75 = ssub.f32 %s70, 1.0
    %v76 = vstv %s75
    %v77 = vmul.f32 %v76, %v73
    %v78 = vmul.f32 %v76, %v74
    %v79 = vadd.f32 %v77, 1.0
    %v80 = vadd.f32 %v78, 1.0
    %v81 = vand.u32 2147483647, %v71
    %v82 = vand.u32 2147483647, %v72
    %v83 = vsub.f32 0.0, %v81
    %v84 = vsub.f32 0.0, %v82
    %v85 = vmul.f32 %v83, 1.442695
    %v86 = vpow.pop %v85
    %v87 = vmul.f32 %v84, 1.442695
    %v88 = vpow.pop %v87
    %v89 = vadd.f32 %v86, 1.0
    %v90 = vlog2.pop %v89
    %v91 = vmul.f32 %v90, 0.6931472
    %v92 = vmul.f32 -0.5, %v86
    %v93 = vadd.f32 %v92, 1.0
    %v94 = vmul.f32 %v93, %v86
    %v95 = vand.u32 2147483647, %v86
    %vm96 = vcmp.lt.f32.partialorder %v95, 0.0004427343
    %v97 = vsel %vm96, %v94, %v91
    %v98 = vadd.f32 %v88, 1.0
    %v99 = vlog2.pop %v98
    %v100 = vmul.f32 %v99, 0.6931472
    %v101 = vmul.f32 -0.5, %v88
    %v102 = vadd.f32 %v101, 1.0
    %v103 = vmul.f32 %v102, %v88
    %v104 = vand.u32 2147483647, %v88
    %vm105 = vcmp.lt.f32.partialorder %v104, 0.0004427343
    %v106 = vsel %vm105, %v103, %v100
    %v107 = vsub.f32 0.0, %v71
    %v108 = vsub.f32 0.0, %v72
    %v109 = vmax.f32 %v107, 0.0
    %v110 = vmax.f32 %v108, 0.0
    %v111 = vadd.f32 %v97, %v109
    %v112 = vadd.f32 %v106, %v110
    %v113 = vsub.f32 1.0, %v73
    %v114 = vsub.f32 1.0, %v74
    %v115 = vmul.f32 %v113, %v71
    %v116 = vmul.f32 %v114, %v72
    %v117 = vmul.f32 %v79, %v111
    %v118 = vmul.f32 %v80, %v112
    %v119 = vadd.f32 %v115, %v117
    %v120 = vadd.f32 %v116, %v118
    %v121 = vld [vmem:[#allocation8] sm:$0xff]
    %v122 = vld [vmem:[#allocation8 + $0x8] sm:$0xff]
    %v123 = vadd.f32 %v119, 0.0
    %v124 = vadd.f32 %v120, 0.0
    %v125 = vadd.f32 %v121, %v123
    %v126 = vadd.f32 %v122, %v124
    %127 = vst [vmem:[#allocation8] sm:$0xff] %v125
    %128 = vst [vmem:[#allocation8 + $0x8] sm:$0xff] %v126
    // Predicated region
    $region26: #{tpu_custom_call.1} parent=1 // pred_check
      _
    $region27: #{tpu_custom_call.1} parent=1 // pred_check_branch
      %130 = sbr.rel (0) target = $region29
    $region28: #{tpu_custom_call.1} parent=1 // pred_region
      %s132 = ssub.s32 256, 256
      %133 = vsyncadd [#allocation5], %s132
      %s134 = sshll.u32 [#allocation8], 4
      %s135 = int_to_ptr.vmem [resolvable:$true] %s134
      %140 = dma.vmem_to_hbm [thread:$0]  %s135, 256, %s3, [#allocation5], 128, 128, 8
    $region29: #{tpu_custom_call.1} parent=1 // pred_fallthru
      _
    // Predicated region
    $region30: #{tpu_custom_call.1} parent=1 // pred_check
      _
    $region31: #{tpu_custom_call.1} parent=1 // pred_check_branch
      %142 = sbr.rel (0) target = $region33
    $region32: #{tpu_custom_call.1} parent=1 // pred_region
      %143 = dma.done [#allocation5], 256
    $region33: #{tpu_custom_call.1} parent=1 // pred_fallthru
      _
    %144 = vsyncpa [#allocation4], 1
    %145 = vsyncpa [#allocation7], 1
    %146 = vsyncpa [#allocation5], 1

</llo_original>
